<compile_context>
chip_gen: v5e
topology: v5e:2x2
jax: 0.10.0
libtpu: 0.0.40
codegen_flags: <defaults>
</compile_context>

<pallas_src>
import functools
import math

import jax
import jax.numpy as jnp
from jax.experimental import pallas as pl
from jax.experimental.pallas import tpu as pltpu


def _residual_block_kernel(x_ref, mask_ref, w1_ref, b1_ref, w2_ref, b2_ref,
                           o_ref, *, height, width, eps):
    """One batch element: x_ref (1, C, H*W) -> o_ref (1, C, H*W)."""
    hw = height * width
    col0 = mask_ref[0:1, :] != 0        # (1, HW)  w == 0
    col_last = mask_ref[1:2, :] != 0    # (1, HW)  w == W-1

    def shift_w(a, off):
        # reflect-pad-1 shift along W, done in the flat (C, H*W) layout.
        left = jnp.concatenate([a[:, :1], a[:, :-1]], axis=1)    # value at j-1
        right = jnp.concatenate([a[:, 1:], a[:, -1:]], axis=1)   # value at j+1
        if off == -1:
            # reads x[w-1]; at w==0 reflection gives x[1] (== value at j+1)
            return jnp.where(col0, right, left)
        # off == +1: reads x[w+1]; at w==W-1 reflection gives x[W-2] (== j-1)
        return jnp.where(col_last, left, right)

    def shift_h(a, off):
        # reflect-pad-1 shift along H == shift by `width` lanes; the reflected
        # edge row is a contiguous chunk, so pure concats suffice.
        w = width
        if off == -1:
            # row h-1; row 0 reflects to row 1
            return jnp.concatenate([a[:, w:2 * w], a[:, :hw - w]], axis=1)
        # off == +1: row h+1; row H-1 reflects to row H-2
        return jnp.concatenate([a[:, w:], a[:, hw - 2 * w:hw - w]], axis=1)

    def conv3x3(a, w_ref, b_ref):
        rows = [shift_h(a, -1), a, shift_h(a, 1)]                # ky = 0,1,2
        taps = []
        for r in rows:
            taps.extend([shift_w(r, -1), r, shift_w(r, 1)])      # kx = 0,1,2
        patch = jnp.concatenate(taps, axis=0)                    # (9*C, HW)
        out = jnp.dot(w_ref[...], patch,
                      preferred_element_type=jnp.float32)        # (C, HW), MXU
        return out + b_ref[...]                                  # (C,1) bcast

    def instance_norm(a):
        m = jnp.mean(a, axis=-1, keepdims=True)                  # (C, 1)
        c = a - m
        v = jnp.mean(c * c, axis=-1, keepdims=True)              # biased var
        return c * jax.lax.rsqrt(v + eps)

    x = x_ref[0].astype(jnp.float32)                             # (C, HW)
    h = jnp.maximum(instance_norm(conv3x3(x, w1_ref, b1_ref)), 0.0)
    y = x + instance_norm(conv3x3(h, w2_ref, b2_ref))
    o_ref[0] = y.astype(o_ref.dtype)


def residual_block(x, w1, b1, w2, b2, *, eps=1e-5):
    """Forward pass of ResidualBlock.  x: (B, C, H, W); w*: (C, C, 3, 3); b*: (C,)."""
    B, C, H, W = x.shape
    assert H >= 2 and W >= 2, "reflection pad 1 needs spatial dims >= 2"
    assert w1.shape == (C, C, 3, 3) and w2.shape == (C, C, 3, 3)
    HW = H * W

    # Lane-dense view of the images (last two dims are contiguous -> free).
    x_flat = x.reshape(B, C, HW)

    # Column-boundary masks for the W-direction reflect shifts.
    col = jnp.arange(HW, dtype=jnp.int32) % W
    masks = jnp.stack([col == 0, col == W - 1], axis=0).astype(jnp.int32)

    # Weights as (C_out, 9*C_in) matmul matrices, rows ordered tap-major
    # (t = ky*3 + kx) then input channel, matching the in-kernel patch matrix.
    def prep_w(w):
        return jnp.transpose(w.astype(jnp.float32), (0, 2, 3, 1)).reshape(C, 9 * C)

    def prep_b(b):
        return b.astype(jnp.float32).reshape(C, 1)

    def full_spec(shape):
        return pl.BlockSpec(shape, lambda b, _s=shape: tuple(0 for _ in _s))

    kernel = functools.partial(_residual_block_kernel,
                               height=H, width=W, eps=eps)

    out_flat = pl.pallas_call(
        kernel,
        out_shape=jax.ShapeDtypeStruct((B, C, HW), x.dtype),
        grid=(B,),
        in_specs=[
            pl.BlockSpec((1, C, HW), lambda b: (b, 0, 0)),   # x
            full_spec((2, HW)),                              # column masks
            full_spec((C, 9 * C)),                           # w1 matrix
            full_spec((C, 1)),                               # b1
            full_spec((C, 9 * C)),                           # w2 matrix
            full_spec((C, 1)),                               # b2
        ],
        out_specs=pl.BlockSpec((1, C, HW), lambda b: (b, 0, 0)),
        compiler_params=pltpu.CompilerParams(
            dimension_semantics=("parallel",),
        ),
    )(x_flat, masks, prep_w(w1), prep_b(b1), prep_w(w2), prep_b(b2))

    return out_flat.reshape(B, C, H, W)


def _reference_residual_block(x, w1, b1, w2, b2, eps=1e-5):
    """Plain-JAX reference of ResidualBlock.forward (correctness check)."""
    def conv(h, w, b):
        _, _, H, W = h.shape
        hp = jnp.pad(h, ((0, 0), (0, 0), (1, 1), (1, 1)), mode="reflect")
        out = jnp.zeros_like(h)
        for ky in range(3):
            for kx in range(3):
                patch = hp[:, :, ky:ky + H, kx:kx + W]
                out = out + jnp.einsum(
                    "oi,bihw->bohw", w[:, :, ky, kx], patch,
                    precision=jax.lax.Precision.HIGHEST)
        return out + b[None, :, None, None]

    def inorm(h):
        m = jnp.mean(h, axis=(2, 3), keepdims=True)
        c = h - m
        v = jnp.mean(c * c, axis=(2, 3), keepdims=True)
        return c * jax.lax.rsqrt(v + eps)

    h = jnp.maximum(inorm(conv(x, w1, b1)), 0.0)
    h = inorm(conv(h, w2, b2))
    return x + h


if __name__ == "__main__":
    key = jax.random.PRNGKey(0)
    kx, kw1, kb1, kw2, kb2 = jax.random.split(key, 5)

    B, C, H, W = 2, 4, 16, 16
    fan = 1.0 / math.sqrt(C * 9)          # ~ PyTorch Conv2d default init scale
    x = jax.random.normal(kx, (B, C, H, W), jnp.float32)
    w1 = jax.random.normal(kw1, (C, C, 3, 3), jnp.float32) * fan
    b1 = jax.random.normal(kb1, (C,), jnp.float32) * fan
    w2 = jax.random.normal(kw2, (C, C, 3, 3), jnp.float32) * fan
    b2 = jax.random.normal(kb2, (C,), jnp.float32) * fan

    y = residual_block(x, w1, b1, w2, b2)
    y = jax.block_until_ready(y)
    assert y.shape == (B, C, H, W), y.shape

    y_ref = _reference_residual_block(x, w1, b1, w2, b2)
    max_err = float(jnp.max(jnp.abs(y - y_ref)))
    assert jnp.allclose(y, y_ref, atol=1e-3, rtol=1e-3), max_err

    print("KERNEL_OK")
</pallas_src>

<mosaic_0001>
module attributes {stable_mosaic.version = 11 : i64} {
  func.func @_residual_block_kernel(%arg0: i32, %arg1: memref<1x4x256xf32, #tpu.memory_space<vmem>>, %arg2: memref<2x256xi32, #tpu.memory_space<vmem>>, %arg3: memref<4x36xf32, #tpu.memory_space<vmem>>, %arg4: memref<4x1xf32, #tpu.memory_space<vmem>>, %arg5: memref<4x36xf32, #tpu.memory_space<vmem>>, %arg6: memref<4x1xf32, #tpu.memory_space<vmem>>, %arg7: memref<1x4x256xf32, #tpu.memory_space<vmem>>) attributes {dimension_semantics = [#tpu.dimension_semantics<parallel>], iteration_bounds = array<i64: 2>, scalar_prefetch = 0 : i64, scratch_operands = 0 : i64, tpu.core_type = #tpu.core_type<tc>, window_params = [{transform_indices = @transform_0, window_bounds = array<i64: 1, 4, 256>}, {pipeline_mode = #tpu.pipeline_mode<synchronous>, transform_indices = @transform_1, window_bounds = array<i64: 2, 256>}, {pipeline_mode = #tpu.pipeline_mode<synchronous>, transform_indices = @transform_2, window_bounds = array<i64: 4, 36>}, {pipeline_mode = #tpu.pipeline_mode<synchronous>, transform_indices = @transform_3, window_bounds = array<i64: 4, 1>}, {pipeline_mode = #tpu.pipeline_mode<synchronous>, transform_indices = @transform_4, window_bounds = array<i64: 4, 36>}, {pipeline_mode = #tpu.pipeline_mode<synchronous>, transform_indices = @transform_5, window_bounds = array<i64: 4, 1>}, {transform_indices = @transform_6, window_bounds = array<i64: 1, 4, 256>}]} {
    %c0 = arith.constant 0 : index
    %c0_0 = arith.constant 0 : index
    %0 = vector.load %arg2[%c0, %c0_0] : memref<2x256xi32, #tpu.memory_space<vmem>>, vector<1x256xi32>
    %c0_i32 = arith.constant 0 : i32
    %1 = vector.broadcast %c0_i32 : i32 to vector<1x256xi32>
    %2 = arith.cmpi ne, %0, %1 : vector<1x256xi32>
    %c1 = arith.constant 1 : index
    %c0_1 = arith.constant 0 : index
    %3 = vector.load %arg2[%c1, %c0_1] : memref<2x256xi32, #tpu.memory_space<vmem>>, vector<1x256xi32>
    %c0_i32_2 = arith.constant 0 : i32
    %4 = vector.broadcast %c0_i32_2 : i32 to vector<1x256xi32>
    %5 = arith.cmpi ne, %3, %4 : vector<1x256xi32>
    %c0_3 = arith.constant 0 : index
    %c0_4 = arith.constant 0 : index
    %c0_5 = arith.constant 0 : index
    %6 = vector.load %arg1[%c0_3, %c0_4, %c0_5] : memref<1x4x256xf32, #tpu.memory_space<vmem>>, vector<1x4x256xf32>
    %7 = vector.shape_cast %6 : vector<1x4x256xf32> to vector<4x256xf32>
    %8 = vector.extract_strided_slice %7 {offsets = [0, 16], sizes = [4, 16], strides = [1, 1]} : vector<4x256xf32> to vector<4x16xf32>
    %9 = vector.extract_strided_slice %7 {offsets = [0, 0], sizes = [4, 240], strides = [1, 1]} : vector<4x256xf32> to vector<4x240xf32>
    %10 = tpu.concatenate %8, %9 in 1 : vector<4x16xf32>, vector<4x240xf32> -> vector<4x256xf32>
    %11 = vector.extract_strided_slice %7 {offsets = [0, 16], sizes = [4, 240], strides = [1, 1]} : vector<4x256xf32> to vector<4x240xf32>
    %12 = vector.extract_strided_slice %7 {offsets = [0, 224], sizes = [4, 16], strides = [1, 1]} : vector<4x256xf32> to vector<4x16xf32>
    %13 = tpu.concatenate %11, %12 in 1 : vector<4x240xf32>, vector<4x16xf32> -> vector<4x256xf32>
    %14 = vector.extract_strided_slice %10 {offsets = [0, 0], sizes = [4, 1], strides = [1, 1]} : vector<4x256xf32> to vector<4x1xf32>
    %15 = vector.extract_strided_slice %10 {offsets = [0, 0], sizes = [4, 255], strides = [1, 1]} : vector<4x256xf32> to vector<4x255xf32>
    %16 = tpu.concatenate %14, %15 in 1 : vector<4x1xf32>, vector<4x255xf32> -> vector<4x256xf32>
    %17 = vector.extract_strided_slice %10 {offsets = [0, 1], sizes = [4, 255], strides = [1, 1]} : vector<4x256xf32> to vector<4x255xf32>
    %18 = vector.extract_strided_slice %10 {offsets = [0, 255], sizes = [4, 1], strides = [1, 1]} : vector<4x256xf32> to vector<4x1xf32>
    %19 = tpu.concatenate %17, %18 in 1 : vector<4x255xf32>, vector<4x1xf32> -> vector<4x256xf32>
    %20 = vector.shape_cast %2 : vector<1x256xi1> to vector<1x256xi1>
    %21 = vector.broadcast %20 : vector<1x256xi1> to vector<4x256xi1>
    %22 = arith.select %21, %19, %16 : vector<4x256xi1>, vector<4x256xf32>
    %23 = vector.extract_strided_slice %10 {offsets = [0, 0], sizes = [4, 1], strides = [1, 1]} : vector<4x256xf32> to vector<4x1xf32>
    %24 = vector.extract_strided_slice %10 {offsets = [0, 0], sizes = [4, 255], strides = [1, 1]} : vector<4x256xf32> to vector<4x255xf32>
    %25 = tpu.concatenate %23, %24 in 1 : vector<4x1xf32>, vector<4x255xf32> -> vector<4x256xf32>
    %26 = vector.extract_strided_slice %10 {offsets = [0, 1], sizes = [4, 255], strides = [1, 1]} : vector<4x256xf32> to vector<4x255xf32>
    %27 = vector.extract_strided_slice %10 {offsets = [0, 255], sizes = [4, 1], strides = [1, 1]} : vector<4x256xf32> to vector<4x1xf32>
    %28 = tpu.concatenate %26, %27 in 1 : vector<4x255xf32>, vector<4x1xf32> -> vector<4x256xf32>
    %29 = vector.shape_cast %5 : vector<1x256xi1> to vector<1x256xi1>
    %30 = vector.broadcast %29 : vector<1x256xi1> to vector<4x256xi1>
    %31 = arith.select %30, %25, %28 : vector<4x256xi1>, vector<4x256xf32>
    %32 = vector.extract_strided_slice %7 {offsets = [0, 0], sizes = [4, 1], strides = [1, 1]} : vector<4x256xf32> to vector<4x1xf32>
    %33 = vector.extract_strided_slice %7 {offsets = [0, 0], sizes = [4, 255], strides = [1, 1]} : vector<4x256xf32> to vector<4x255xf32>
    %34 = tpu.concatenate %32, %33 in 1 : vector<4x1xf32>, vector<4x255xf32> -> vector<4x256xf32>
    %35 = vector.extract_strided_slice %7 {offsets = [0, 1], sizes = [4, 255], strides = [1, 1]} : vector<4x256xf32> to vector<4x255xf32>
    %36 = vector.extract_strided_slice %7 {offsets = [0, 255], sizes = [4, 1], strides = [1, 1]} : vector<4x256xf32> to vector<4x1xf32>
    %37 = tpu.concatenate %35, %36 in 1 : vector<4x255xf32>, vector<4x1xf32> -> vector<4x256xf32>
    %38 = vector.shape_cast %2 : vector<1x256xi1> to vector<1x256xi1>
    %39 = vector.broadcast %38 : vector<1x256xi1> to vector<4x256xi1>
    %40 = arith.select %39, %37, %34 : vector<4x256xi1>, vector<4x256xf32>
    %41 = vector.extract_strided_slice %7 {offsets = [0, 0], sizes = [4, 1], strides = [1, 1]} : vector<4x256xf32> to vector<4x1xf32>
    %42 = vector.extract_strided_slice %7 {offsets = [0, 0], sizes = [4, 255], strides = [1, 1]} : vector<4x256xf32> to vector<4x255xf32>
    %43 = tpu.concatenate %41, %42 in 1 : vector<4x1xf32>, vector<4x255xf32> -> vector<4x256xf32>
    %44 = vector.extract_strided_slice %7 {offsets = [0, 1], sizes = [4, 255], strides = [1, 1]} : vector<4x256xf32> to vector<4x255xf32>
    %45 = vector.extract_strided_slice %7 {offsets = [0, 255], sizes = [4, 1], strides = [1, 1]} : vector<4x256xf32> to vector<4x1xf32>
    %46 = tpu.concatenate %44, %45 in 1 : vector<4x255xf32>, vector<4x1xf32> -> vector<4x256xf32>
    %47 = vector.shape_cast %5 : vector<1x256xi1> to vector<1x256xi1>
    %48 = vector.broadcast %47 : vector<1x256xi1> to vector<4x256xi1>
    %49 = arith.select %48, %43, %46 : vector<4x256xi1>, vector<4x256xf32>
    %50 = vector.extract_strided_slice %13 {offsets = [0, 0], sizes = [4, 1], strides = [1, 1]} : vector<4x256xf32> to vector<4x1xf32>
    %51 = vector.extract_strided_slice %13 {offsets = [0, 0], sizes = [4, 255], strides = [1, 1]} : vector<4x256xf32> to vector<4x255xf32>
    %52 = tpu.concatenate %50, %51 in 1 : vector<4x1xf32>, vector<4x255xf32> -> vector<4x256xf32>
    %53 = vector.extract_strided_slice %13 {offsets = [0, 1], sizes = [4, 255], strides = [1, 1]} : vector<4x256xf32> to vector<4x255xf32>
    %54 = vector.extract_strided_slice %13 {offsets = [0, 255], sizes = [4, 1], strides = [1, 1]} : vector<4x256xf32> to vector<4x1xf32>
    %55 = tpu.concatenate %53, %54 in 1 : vector<4x255xf32>, vector<4x1xf32> -> vector<4x256xf32>
    %56 = vector.shape_cast %2 : vector<1x256xi1> to vector<1x256xi1>
    %57 = vector.broadcast %56 : vector<1x256xi1> to vector<4x256xi1>
    %58 = arith.select %57, %55, %52 : vector<4x256xi1>, vector<4x256xf32>
    %59 = vector.extract_strided_slice %13 {offsets = [0, 0], sizes = [4, 1], strides = [1, 1]} : vector<4x256xf32> to vector<4x1xf32>
    %60 = vector.extract_strided_slice %13 {offsets = [0, 0], sizes = [4, 255], strides = [1, 1]} : vector<4x256xf32> to vector<4x255xf32>
    %61 = tpu.concatenate %59, %60 in 1 : vector<4x1xf32>, vector<4x255xf32> -> vector<4x256xf32>
    %62 = vector.extract_strided_slice %13 {offsets = [0, 1], sizes = [4, 255], strides = [1, 1]} : vector<4x256xf32> to vector<4x255xf32>
    %63 = vector.extract_strided_slice %13 {offsets = [0, 255], sizes = [4, 1], strides = [1, 1]} : vector<4x256xf32> to vector<4x1xf32>
    %64 = tpu.concatenate %62, %63 in 1 : vector<4x255xf32>, vector<4x1xf32> -> vector<4x256xf32>
    %65 = vector.shape_cast %5 : vector<1x256xi1> to vector<1x256xi1>
    %66 = vector.broadcast %65 : vector<1x256xi1> to vector<4x256xi1>
    %67 = arith.select %66, %61, %64 : vector<4x256xi1>, vector<4x256xf32>
    %68 = tpu.concatenate %22, %10, %31, %40, %7, %49, %58, %13, %67 in 0 : vector<4x256xf32>, vector<4x256xf32>, vector<4x256xf32>, vector<4x256xf32>, vector<4x256xf32>, vector<4x256xf32>, vector<4x256xf32>, vector<4x256xf32>, vector<4x256xf32> -> vector<36x256xf32>
    %c0_6 = arith.constant 0 : index
    %c0_7 = arith.constant 0 : index
    %69 = vector.load %arg3[%c0_6, %c0_7] : memref<4x36xf32, #tpu.memory_space<vmem>>, vector<4x36xf32>
    %cst = arith.constant dense<0.000000e+00> : vector<4x256xf32>
    %70 = tpu.matmul %69, %68, %cst {dimension_numbers = #tpu.dot_dimension_numbers<[1], [0], [0], [1], [0, 0, 1, 1], [], []>} : vector<4x36xf32>, vector<36x256xf32>, vector<4x256xf32> -> vector<4x256xf32>
    %c0_8 = arith.constant 0 : index
    %c0_9 = arith.constant 0 : index
    %71 = vector.load %arg4[%c0_8, %c0_9] : memref<4x1xf32, #tpu.memory_space<vmem>>, vector<4x1xf32>
    %72 = vector.broadcast %71 : vector<4x1xf32> to vector<4x256xf32>
    %73 = arith.addf %70, %72 : vector<4x256xf32>
    %cst_10 = arith.constant dense<0.000000e+00> : vector<4xf32>
    %74 = vector.multi_reduction <add>, %73, %cst_10 [1] : vector<4x256xf32> to vector<4xf32>
    %75 = vector.shape_cast %74 : vector<4xf32> to vector<4x1xf32>
    %cst_11 = arith.constant 2.560000e+02 : f32
    %76 = vector.broadcast %cst_11 : f32 to vector<4x1xf32>
    %77 = arith.divf %75, %76 : vector<4x1xf32>
    %78 = vector.broadcast %77 : vector<4x1xf32> to vector<4x256xf32>
    %79 = arith.subf %73, %78 : vector<4x256xf32>
    %80 = arith.mulf %79, %79 : vector<4x256xf32>
    %cst_12 = arith.constant dense<0.000000e+00> : vector<4xf32>
    %81 = vector.multi_reduction <add>, %80, %cst_12 [1] : vector<4x256xf32> to vector<4xf32>
    %82 = vector.shape_cast %81 : vector<4xf32> to vector<4x1xf32>
    %cst_13 = arith.constant 2.560000e+02 : f32
    %83 = vector.broadcast %cst_13 : f32 to vector<4x1xf32>
    %84 = arith.divf %82, %83 : vector<4x1xf32>
    %cst_14 = arith.constant 9.99999974E-6 : f32
    %85 = vector.broadcast %cst_14 : f32 to vector<4x1xf32>
    %86 = arith.addf %84, %85 : vector<4x1xf32>
    %87 = math.rsqrt %86 : vector<4x1xf32>
    %88 = vector.broadcast %87 : vector<4x1xf32> to vector<4x256xf32>
    %89 = arith.mulf %79, %88 : vector<4x256xf32>
    %cst_15 = arith.constant 0.000000e+00 : f32
    %90 = vector.broadcast %cst_15 : f32 to vector<4x256xf32>
    %91 = arith.maximumf %89, %90 : vector<4x256xf32>
    %92 = vector.extract_strided_slice %91 {offsets = [0, 16], sizes = [4, 16], strides = [1, 1]} : vector<4x256xf32> to vector<4x16xf32>
    %93 = vector.extract_strided_slice %91 {offsets = [0, 0], sizes = [4, 240], strides = [1, 1]} : vector<4x256xf32> to vector<4x240xf32>
    %94 = tpu.concatenate %92, %93 in 1 : vector<4x16xf32>, vector<4x240xf32> -> vector<4x256xf32>
    %95 = vector.extract_strided_slice %91 {offsets = [0, 16], sizes = [4, 240], strides = [1, 1]} : vector<4x256xf32> to vector<4x240xf32>
    %96 = vector.extract_strided_slice %91 {offsets = [0, 224], sizes = [4, 16], strides = [1, 1]} : vector<4x256xf32> to vector<4x16xf32>
    %97 = tpu.concatenate %95, %96 in 1 : vector<4x240xf32>, vector<4x16xf32> -> vector<4x256xf32>
    %98 = vector.extract_strided_slice %94 {offsets = [0, 0], sizes = [4, 1], strides = [1, 1]} : vector<4x256xf32> to vector<4x1xf32>
    %99 = vector.extract_strided_slice %94 {offsets = [0, 0], sizes = [4, 255], strides = [1, 1]} : vector<4x256xf32> to vector<4x255xf32>
    %100 = tpu.concatenate %98, %99 in 1 : vector<4x1xf32>, vector<4x255xf32> -> vector<4x256xf32>
    %101 = vector.extract_strided_slice %94 {offsets = [0, 1], sizes = [4, 255], strides = [1, 1]} : vector<4x256xf32> to vector<4x255xf32>
    %102 = vector.extract_strided_slice %94 {offsets = [0, 255], sizes = [4, 1], strides = [1, 1]} : vector<4x256xf32> to vector<4x1xf32>
    %103 = tpu.concatenate %101, %102 in 1 : vector<4x255xf32>, vector<4x1xf32> -> vector<4x256xf32>
    %104 = vector.shape_cast %2 : vector<1x256xi1> to vector<1x256xi1>
    %105 = vector.broadcast %104 : vector<1x256xi1> to vector<4x256xi1>
    %106 = arith.select %105, %103, %100 : vector<4x256xi1>, vector<4x256xf32>
    %107 = vector.extract_strided_slice %94 {offsets = [0, 0], sizes = [4, 1], strides = [1, 1]} : vector<4x256xf32> to vector<4x1xf32>
    %108 = vector.extract_strided_slice %94 {offsets = [0, 0], sizes = [4, 255], strides = [1, 1]} : vector<4x256xf32> to vector<4x255xf32>
    %109 = tpu.concatenate %107, %108 in 1 : vector<4x1xf32>, vector<4x255xf32> -> vector<4x256xf32>
    %110 = vector.extract_strided_slice %94 {offsets = [0, 1], sizes = [4, 255], strides = [1, 1]} : vector<4x256xf32> to vector<4x255xf32>
    %111 = vector.extract_strided_slice %94 {offsets = [0, 255], sizes = [4, 1], strides = [1, 1]} : vector<4x256xf32> to vector<4x1xf32>
    %112 = tpu.concatenate %110, %111 in 1 : vector<4x255xf32>, vector<4x1xf32> -> vector<4x256xf32>
    %113 = vector.shape_cast %5 : vector<1x256xi1> to vector<1x256xi1>
    %114 = vector.broadcast %113 : vector<1x256xi1> to vector<4x256xi1>
    %115 = arith.select %114, %109, %112 : vector<4x256xi1>, vector<4x256xf32>
    %116 = vector.extract_strided_slice %91 {offsets = [0, 0], sizes = [4, 1], strides = [1, 1]} : vector<4x256xf32> to vector<4x1xf32>
    %117 = vector.extract_strided_slice %91 {offsets = [0, 0], sizes = [4, 255], strides = [1, 1]} : vector<4x256xf32> to vector<4x255xf32>
    %118 = tpu.concatenate %116, %117 in 1 : vector<4x1xf32>, vector<4x255xf32> -> vector<4x256xf32>
    %119 = vector.extract_strided_slice %91 {offsets = [0, 1], sizes = [4, 255], strides = [1, 1]} : vector<4x256xf32> to vector<4x255xf32>
    %120 = vector.extract_strided_slice %91 {offsets = [0, 255], sizes = [4, 1], strides = [1, 1]} : vector<4x256xf32> to vector<4x1xf32>
    %121 = tpu.concatenate %119, %120 in 1 : vector<4x255xf32>, vector<4x1xf32> -> vector<4x256xf32>
    %122 = vector.shape_cast %2 : vector<1x256xi1> to vector<1x256xi1>
    %123 = vector.broadcast %122 : vector<1x256xi1> to vector<4x256xi1>
    %124 = arith.select %123, %121, %118 : vector<4x256xi1>, vector<4x256xf32>
    %125 = vector.extract_strided_slice %91 {offsets = [0, 0], sizes = [4, 1], strides = [1, 1]} : vector<4x256xf32> to vector<4x1xf32>
    %126 = vector.extract_strided_slice %91 {offsets = [0, 0], sizes = [4, 255], strides = [1, 1]} : vector<4x256xf32> to vector<4x255xf32>
    %127 = tpu.concatenate %125, %126 in 1 : vector<4x1xf32>, vector<4x255xf32> -> vector<4x256xf32>
    %128 = vector.extract_strided_slice %91 {offsets = [0, 1], sizes = [4, 255], strides = [1, 1]} : vector<4x256xf32> to vector<4x255xf32>
    %129 = vector.extract_strided_slice %91 {offsets = [0, 255], sizes = [4, 1], strides = [1, 1]} : vector<4x256xf32> to vector<4x1xf32>
    %130 = tpu.concatenate %128, %129 in 1 : vector<4x255xf32>, vector<4x1xf32> -> vector<4x256xf32>
    %131 = vector.shape_cast %5 : vector<1x256xi1> to vector<1x256xi1>
    %132 = vector.broadcast %131 : vector<1x256xi1> to vector<4x256xi1>
    %133 = arith.select %132, %127, %130 : vector<4x256xi1>, vector<4x256xf32>
    %134 = vector.extract_strided_slice %97 {offsets = [0, 0], sizes = [4, 1], strides = [1, 1]} : vector<4x256xf32> to vector<4x1xf32>
    %135 = vector.extract_strided_slice %97 {offsets = [0, 0], sizes = [4, 255], strides = [1, 1]} : vector<4x256xf32> to vector<4x255xf32>
    %136 = tpu.concatenate %134, %135 in 1 : vector<4x1xf32>, vector<4x255xf32> -> vector<4x256xf32>
    %137 = vector.extract_strided_slice %97 {offsets = [0, 1], sizes = [4, 255], strides = [1, 1]} : vector<4x256xf32> to vector<4x255xf32>
    %138 = vector.extract_strided_slice %97 {offsets = [0, 255], sizes = [4, 1], strides = [1, 1]} : vector<4x256xf32> to vector<4x1xf32>
    %139 = tpu.concatenate %137, %138 in 1 : vector<4x255xf32>, vector<4x1xf32> -> vector<4x256xf32>
    %140 = vector.shape_cast %2 : vector<1x256xi1> to vector<1x256xi1>
    %141 = vector.broadcast %140 : vector<1x256xi1> to vector<4x256xi1>
    %142 = arith.select %141, %139, %136 : vector<4x256xi1>, vector<4x256xf32>
    %143 = vector.extract_strided_slice %97 {offsets = [0, 0], sizes = [4, 1], strides = [1, 1]} : vector<4x256xf32> to vector<4x1xf32>
    %144 = vector.extract_strided_slice %97 {offsets = [0, 0], sizes = [4, 255], strides = [1, 1]} : vector<4x256xf32> to vector<4x255xf32>
    %145 = tpu.concatenate %143, %144 in 1 : vector<4x1xf32>, vector<4x255xf32> -> vector<4x256xf32>
    %146 = vector.extract_strided_slice %97 {offsets = [0, 1], sizes = [4, 255], strides = [1, 1]} : vector<4x256xf32> to vector<4x255xf32>
    %147 = vector.extract_strided_slice %97 {offsets = [0, 255], sizes = [4, 1], strides = [1, 1]} : vector<4x256xf32> to vector<4x1xf32>
    %148 = tpu.concatenate %146, %147 in 1 : vector<4x255xf32>, vector<4x1xf32> -> vector<4x256xf32>
    %149 = vector.shape_cast %5 : vector<1x256xi1> to vector<1x256xi1>
    %150 = vector.broadcast %149 : vector<1x256xi1> to vector<4x256xi1>
    %151 = arith.select %150, %145, %148 : vector<4x256xi1>, vector<4x256xf32>
    %152 = tpu.concatenate %106, %94, %115, %124, %91, %133, %142, %97, %151 in 0 : vector<4x256xf32>, vector<4x256xf32>, vector<4x256xf32>, vector<4x256xf32>, vector<4x256xf32>, vector<4x256xf32>, vector<4x256xf32>, vector<4x256xf32>, vector<4x256xf32> -> vector<36x256xf32>
    %c0_16 = arith.constant 0 : index
    %c0_17 = arith.constant 0 : index
    %153 = vector.load %arg5[%c0_16, %c0_17] : memref<4x36xf32, #tpu.memory_space<vmem>>, vector<4x36xf32>
    %cst_18 = arith.constant dense<0.000000e+00> : vector<4x256xf32>
    %154 = tpu.matmul %153, %152, %cst_18 {dimension_numbers = #tpu.dot_dimension_numbers<[1], [0], [0], [1], [0, 0, 1, 1], [], []>} : vector<4x36xf32>, vector<36x256xf32>, vector<4x256xf32> -> vector<4x256xf32>
    %c0_19 = arith.constant 0 : index
    %c0_20 = arith.constant 0 : index
    %155 = vector.load %arg6[%c0_19, %c0_20] : memref<4x1xf32, #tpu.memory_space<vmem>>, vector<4x1xf32>
    %156 = vector.broadcast %155 : vector<4x1xf32> to vector<4x256xf32>
    %157 = arith.addf %154, %156 : vector<4x256xf32>
    %cst_21 = arith.constant dense<0.000000e+00> : vector<4xf32>
    %158 = vector.multi_reduction <add>, %157, %cst_21 [1] : vector<4x256xf32> to vector<4xf32>
    %159 = vector.shape_cast %158 : vector<4xf32> to vector<4x1xf32>
    %cst_22 = arith.constant 2.560000e+02 : f32
    %160 = vector.broadcast %cst_22 : f32 to vector<4x1xf32>
    %161 = arith.divf %159, %160 : vector<4x1xf32>
    %162 = vector.broadcast %161 : vector<4x1xf32> to vector<4x256xf32>
    %163 = arith.subf %157, %162 : vector<4x256xf32>
    %164 = arith.mulf %163, %163 : vector<4x256xf32>
    %cst_23 = arith.constant dense<0.000000e+00> : vector<4xf32>
    %165 = vector.multi_reduction <add>, %164, %cst_23 [1] : vector<4x256xf32> to vector<4xf32>
    %166 = vector.shape_cast %165 : vector<4xf32> to vector<4x1xf32>
    %cst_24 = arith.constant 2.560000e+02 : f32
    %167 = vector.broadcast %cst_24 : f32 to vector<4x1xf32>
    %168 = arith.divf %166, %167 : vector<4x1xf32>
    %cst_25 = arith.constant 9.99999974E-6 : f32
    %169 = vector.broadcast %cst_25 : f32 to vector<4x1xf32>
    %170 = arith.addf %168, %169 : vector<4x1xf32>
    %171 = math.rsqrt %170 : vector<4x1xf32>
    %172 = vector.broadcast %171 : vector<4x1xf32> to vector<4x256xf32>
    %173 = arith.mulf %163, %172 : vector<4x256xf32>
    %174 = arith.addf %7, %173 : vector<4x256xf32>
    %c0_26 = arith.constant 0 : index
    %c0_27 = arith.constant 0 : index
    %c0_28 = arith.constant 0 : index
    %175 = vector.load %arg7[%c0_26, %c0_27, %c0_28] : memref<1x4x256xf32, #tpu.memory_space<vmem>>, vector<1x4x256xf32>
    %176 = vector.shape_cast %175 : vector<1x4x256xf32> to vector<4x256xf32>
    %177 = vector.shape_cast %174 : vector<4x256xf32> to vector<1x4x256xf32>
    tpu.vector_store %arg7[%c0_26, %c0_27, %c0_28], %177 {strides = array<i32>} : memref<1x4x256xf32, #tpu.memory_space<vmem>>, vector<1x4x256xf32>,
    return
  }
  func.func @transform_0(%arg0: i32) -> (i32, i32, i32) {
    %c0_i32 = arith.constant 0 : i32
    %c0_i32_0 = arith.constant 0 : i32
    %c0_i32_1 = arith.constant 0 : i32
    return %arg0, %c0_i32, %c0_i32_0 : i32, i32, i32
  }
  func.func @transform_1(%arg0: i32) -> (i32, i32) {
    %c0_i32 = arith.constant 0 : i32
    %c0_i32_0 = arith.constant 0 : i32
    %c0_i32_1 = arith.constant 0 : i32
    return %c0_i32, %c0_i32_0 : i32, i32
  }
  func.func @transform_2(%arg0: i32) -> (i32, i32) {
    %c0_i32 = arith.constant 0 : i32
    %c0_i32_0 = arith.constant 0 : i32
    %c0_i32_1 = arith.constant 0 : i32
    return %c0_i32, %c0_i32_0 : i32, i32
  }
  func.func @transform_3(%arg0: i32) -> (i32, i32) {
    %c0_i32 = arith.constant 0 : i32
    %c0_i32_0 = arith.constant 0 : i32
    %c0_i32_1 = arith.constant 0 : i32
    return %c0_i32, %c0_i32_0 : i32, i32
  }
  func.func @transform_4(%arg0: i32) -> (i32, i32) {
    %c0_i32 = arith.constant 0 : i32
    %c0_i32_0 = arith.constant 0 : i32
    %c0_i32_1 = arith.constant 0 : i32
    return %c0_i32, %c0_i32_0 : i32, i32
  }
  func.func @transform_5(%arg0: i32) -> (i32, i32) {
    %c0_i32 = arith.constant 0 : i32
    %c0_i32_0 = arith.constant 0 : i32
    %c0_i32_1 = arith.constant 0 : i32
    return %c0_i32, %c0_i32_0 : i32, i32
  }
  func.func @transform_6(%arg0: i32) -> (i32, i32, i32) {
    %c0_i32 = arith.constant 0 : i32
    %c0_i32_0 = arith.constant 0 : i32
    %c0_i32_1 = arith.constant 0 : i32
    return %arg0, %c0_i32, %c0_i32_0 : i32, i32, i32
  }
}

</mosaic_0001>

<llo_original>
// kernel: tpu_custom_call.1
$region0: #{tpu_custom_call.1}
  #allocation0 [shape = 'u32[]', space=smem, size = 0x4, offset = 0x4, fixed_abs, tag = 'smem constant byte address 0x4 - core index']
  #allocation1 [shape = 'u32[72,128]{1,0:T(1,128)}', space=vmem, size = 0x9000, scoped, tag = 'internal scratch']
  %s0 = inlined_call_operand.hbm [shape: f32[2,4,256], index: 0, kind: input, shape index: {}]
  %s1 = inlined_call_operand.vmem [shape: s32[2,256], index: 1, kind: input, shape index: {}]
  %s2 = inlined_call_operand.vmem [shape: f32[4,36], index: 2, kind: input, shape index: {}]
  %s3 = inlined_call_operand.vmem [shape: f32[4,1], index: 3, kind: input, shape index: {}]
  %s4 = inlined_call_operand.hbm [shape: f32[4,36], index: 4, kind: input, shape index: {}]
  %s5 = inlined_call_operand.vmem [shape: f32[4,1], index: 5, kind: input, shape index: {}]
  %s6 = inlined_call_operand.hbm [shape: f32[2,4,256], index: 6, kind: output, shape index: {}]
  %s7 = sld [smem:[#allocation0]]
  $region65: #{tpu_custom_call.1} parent=0
    _
  %s9 = ssub.s32 1, %s7
  %s10 = scalar_select 0, %s9, %s7
  $region1: #{tpu_custom_call.1} parent=0
    #allocation2 [shape = 'u8[8192]{0}', space=vmem, size = 0x2000, scoped, tag = 'input window, operand 0']
    #allocation3 [shape = 's32[2]{0}', space=sflag, size = 0x8, scoped, tag = 'scoped memory for tpu_custom_call.1']
    #allocation4 [shape = 's32[2]{0}', space=sflag, size = 0x8, scoped, tag = 'scoped memory for tpu_custom_call.1']
    #allocation5 [shape = 'u8[2048]{0}', space=vmem, size = 0x800, scoped, tag = 'input window, operand 4, single buffered']
    #allocation6 [shape = 's32[1]{0}', space=sflag, size = 0x4, scoped, tag = 'scoped memory for tpu_custom_call.1']
    #allocation7 [shape = 'u8[8192]{0}', space=vmem, size = 0x2000, scoped, tag = 'output window, operand 0']
    %11 = vsyncpa [#allocation3], 0
    %s12 = scalar_lea.sflag [#allocation3], 1
    %13 = vsyncpa %s12, 0
    %14 = vsyncpa [#allocation6], 0
    %15 = vsyncpa [#allocation4], 0
    %s16 = scalar_lea.sflag [#allocation4], 1
    %17 = vsyncpa %s16, 0
    loop: start=0, step=1, limit=4
    $region2: #{tpu_custom_call.1} parent=1 // loop_pre_header
      _
    $region3: #{tpu_custom_call.1} parent=1 // loop_header
      %s19 = sphi 0, %s23
      %p20 = scmp.ge.s32.totalorder %s19, 4
      %s29 = sphi 0, %s31
      %s32 = sphi 0, %s29
      %s33 = sphi 0, %s32
      %s49 = sphi 0, %s33
      %s53 = sphi 0, %s53
      %s55 = sphi 0, %s53
      %s56 = sphi 0, %s55
      %s70 = sphi 0, %s56
      %s74 = sphi 0, %s74
      %s76 = sphi 0, %s74
      %s77 = sphi 0, %s76
      %s91 = sphi 0, %s77
      %s95 = sphi 0, %s95
      %s97 = sphi 0, %s95
      %s98 = sphi 0, %s97
      %s112 = sphi 0, %s98
      %s116 = sphi 0, %s116
      %s118 = sphi 0, %s116
      %s119 = sphi 0, %s118
      %s133 = sphi 0, %s119
      %s137 = sphi 0, %s137
      %s139 = sphi 0, %s137
      %s140 = sphi 0, %s139
      %s154 = sphi 0, %s140
      %s160 = sphi 0, %s162
      %s163 = sphi 0, %s160
      %s164 = sphi 0, %s163
      %s180 = sphi 0, %s164
    $region4: #{tpu_custom_call.1} parent=1 // loop_header_branch
      %22 = sbr.rel (%p20) target = $region8
    $region5: #{tpu_custom_call.1} parent=1 // loop_body
      %s24 = ssub.s32 %s19, 1
      %s25 = ssub.s32 %s19, 2
      %s26 = sadd.s32 %s19, 1
      %s27 = ssub.s32 %s19, %s26
      %p28 = scmp.eq.s32.totalorder %s27, 0
      %s30 = sadd.s32 %s29, 1
      %s31 = scalar_select %p28, %s29, %s30
      %p34 = pneg %p28
      %p35 = scmp.eq.s32.totalorder %s19, 1
      %p36 = por %p34, %p35
      %p37 = scmp.ne.s32.totalorder %s29, %s32
      %p38 = scmp.eq.s32.totalorder %s19, 0
      %p39 = por %p37, %p38
      %p40 = scmp.ne.s32.totalorder %s29, %s32
      %p41 = scmp.eq.s32.totalorder %s24, 1
      %p42 = por %p40, %p41
      %p43 = scmp.ne.s32.totalorder %s32, %s33
      %p44 = scmp.eq.s32.totalorder %s24, 0
      %p45 = por %p43, %p44
      %p46 = scmp.ne.s32.totalorder %s32, %s33
      %p47 = scmp.eq.s32.totalorder %s25, 1
      %p48 = por %p46, %p47
      %p50 = scmp.ne.s32.totalorder %s33, %s49
      %p51 = scmp.eq.s32.totalorder %s25, 0
      %p52 = por %p50, %p51
      %s54 = sadd.s32 %s53, 1
      %p57 = scmp.eq.s32.totalorder %s19, 1
      %p58 = scmp.ne.s32.totalorder %s53, %s55
      %p59 = scmp.eq.s32.totalorder %s19, 0
      %p60 = por %p58, %p59
      %p61 = scmp.ne.s32.totalorder %s53, %s55
      %p62 = scmp.eq.s32.totalorder %s24, 1
      %p63 = por %p61, %p62
      %p64 = scmp.ne.s32.totalorder %s55, %s56
      %p65 = scmp.eq.s32.totalorder %s24, 0
      %p66 = por %p64, %p65
      %p67 = scmp.ne.s32.totalorder %s55, %s56
      %p68 = scmp.eq.s32.totalorder %s25, 1
      %p69 = por %p67, %p68
      %p71 = scmp.ne.s32.totalorder %s56, %s70
      %p72 = scmp.eq.s32.totalorder %s25, 0
      %p73 = por %p71, %p72
      %s75 = sadd.s32 %s74, 1
      %p78 = scmp.eq.s32.totalorder %s19, 1
      %p79 = scmp.ne.s32.totalorder %s74, %s76
      %p80 = scmp.eq.s32.totalorder %s19, 0
      %p81 = por %p79, %p80
      %p82 = scmp.ne.s32.totalorder %s74, %s76
      %p83 = scmp.eq.s32.totalorder %s24, 1
      %p84 = por %p82, %p83
      %p85 = scmp.ne.s32.totalorder %s76, %s77
      %p86 = scmp.eq.s32.totalorder %s24, 0
      %p87 = por %p85, %p86
      %p88 = scmp.ne.s32.totalorder %s76, %s77
      %p89 = scmp.eq.s32.totalorder %s25, 1
      %p90 = por %p88, %p89
      %p92 = scmp.ne.s32.totalorder %s77, %s91
      %p93 = scmp.eq.s32.totalorder %s25, 0
      %p94 = por %p92, %p93
      %s96 = sadd.s32 %s95, 1
      %p99 = scmp.eq.s32.totalorder %s19, 1
      %p100 = scmp.ne.s32.totalorder %s95, %s97
      %p101 = scmp.eq.s32.totalorder %s19, 0
      %p102 = por %p100, %p101
      %p103 = scmp.ne.s32.totalorder %s95, %s97
      %p104 = scmp.eq.s32.totalorder %s24, 1
      %p105 = por %p103, %p104
      %p106 = scmp.ne.s32.totalorder %s97, %s98
      %p107 = scmp.eq.s32.totalorder %s24, 0
      %p108 = por %p106, %p107
      %p109 = scmp.ne.s32.totalorder %s97, %s98
      %p110 = scmp.eq.s32.totalorder %s25, 1
      %p111 = por %p109, %p110
      %p113 = scmp.ne.s32.totalorder %s98, %s112
      %p114 = scmp.eq.s32.totalorder %s25, 0
      %p115 = por %p113, %p114
      %s117 = sadd.s32 %s116, 1
      %p120 = scmp.eq.s32.totalorder %s19, 1
      %p121 = scmp.ne.s32.totalorder %s116, %s118
      %p122 = scmp.eq.s32.totalorder %s19, 0
      %p123 = por %p121, %p122
      %p124 = scmp.ne.s32.totalorder %s116, %s118
      %p125 = scmp.eq.s32.totalorder %s24, 1
      %p126 = por %p124, %p125
      %p127 = scmp.ne.s32.totalorder %s118, %s119
      %p128 = scmp.eq.s32.totalorder %s24, 0
      %p129 = por %p127, %p128
      %p130 = scmp.ne.s32.totalorder %s118, %s119
      %p131 = scmp.eq.s32.totalorder %s25, 1
      %p132 = por %p130, %p131
      %p134 = scmp.ne.s32.totalorder %s119, %s133
      %p135 = scmp.eq.s32.totalorder %s25, 0
      %p136 = por %p134, %p135
      %s138 = sadd.s32 %s137, 1
      %p141 = scmp.eq.s32.totalorder %s19, 1
      %p142 = scmp.ne.s32.totalorder %s137, %s139
      %p143 = scmp.eq.s32.totalorder %s19, 0
      %p144 = por %p142, %p143
      %p145 = scmp.ne.s32.totalorder %s137, %s139
      %p146 = scmp.eq.s32.totalorder %s24, 1
      %p147 = por %p145, %p146
      %p148 = scmp.ne.s32.totalorder %s139, %s140
      %p149 = scmp.eq.s32.totalorder %s24, 0
      %p150 = por %p148, %p149
      %p151 = scmp.ne.s32.totalorder %s139, %s140
      %p152 = scmp.eq.s32.totalorder %s25, 1
      %p153 = por %p151, %p152
      %p155 = scmp.ne.s32.totalorder %s140, %s154
      %p156 = scmp.eq.s32.totalorder %s25, 0
      %p157 = por %p155, %p156
      %s158 = ssub.s32 %s19, %s26
      %p159 = scmp.eq.s32.totalorder %s158, 0
      %s161 = sadd.s32 %s160, 1
      %s162 = scalar_select %p159, %s160, %s161
      %p165 = pneg %p159
      %p166 = scmp.eq.s32.totalorder %s19, 1
      %p167 = por %p165, %p166
      %p168 = scmp.ne.s32.totalorder %s160, %s163
      %p169 = scmp.eq.s32.totalorder %s19, 0
      %p170 = por %p168, %p169
      %p171 = scmp.ne.s32.totalorder %s160, %s163
      %p172 = scmp.eq.s32.totalorder %s24, 1
      %p173 = por %p171, %p172
      %p174 = scmp.ne.s32.totalorder %s163, %s164
      %p175 = scmp.eq.s32.totalorder %s24, 0
      %p176 = por %p174, %p175
      %p177 = scmp.ne.s32.totalorder %s163, %s164
      %p178 = scmp.eq.s32.totalorder %s25, 1
      %p179 = por %p177, %p178
      %p181 = scmp.ne.s32.totalorder %s164, %s180
      %p182 = scmp.eq.s32.totalorder %s25, 0
      %p183 = por %p181, %p182
      %p184 = scmp.le.s32.totalorder 1, %s19
      %p185 = scmp.lt.s32.totalorder %s19, 3
      %p186 = pnand %p184, %p185
      %p187 = pneg %p186
      // Predicated region
      $region9: #{tpu_custom_call.1} parent=5 // pred_check
        _
      $region10: #{tpu_custom_call.1} parent=5 // pred_check_branch
        %189 = sbr.rel (%p186) target = $region12
      $region11: #{tpu_custom_call.1} parent=5 // pred_region
        %s190 = ssub.s32 %s19, 1
        // Predicated region
        $region13: #{tpu_custom_call.1} parent=11 // pred_check
          %p191 = pneg %p66
        $region14: #{tpu_custom_call.1} parent=11 // pred_check_branch
          %193 = sbr.rel (%p191) target = $region16
        $region15: #{tpu_custom_call.1} parent=11 // pred_region
          _
        $region16: #{tpu_custom_call.1} parent=11 // pred_fallthru
          _
        // Predicated region
        $region17: #{tpu_custom_call.1} parent=11 // pred_check
          %p194 = pneg %p87
        $region18: #{tpu_custom_call.1} parent=11 // pred_check_branch
          %196 = sbr.rel (%p194) target = $region20
        $region19: #{tpu_custom_call.1} parent=11 // pred_region
          _
        $region20: #{tpu_custom_call.1} parent=11 // pred_fallthru
          _
        // Predicated region
        $region21: #{tpu_custom_call.1} parent=11 // pred_check
          %p197 = pneg %p108
        $region22: #{tpu_custom_call.1} parent=11 // pred_check_branch
          %199 = sbr.rel (%p197) target = $region24
        $region23: #{tpu_custom_call.1} parent=11 // pred_region
          _
        $region24: #{tpu_custom_call.1} parent=11 // pred_fallthru
          _
        // Predicated region
        $region25: #{tpu_custom_call.1} parent=11 // pred_check
          %p200 = pneg %p129
        $region26: #{tpu_custom_call.1} parent=11 // pred_check_branch
          %202 = sbr.rel (%p200) target = $region28
        $region27: #{tpu_custom_call.1} parent=11 // pred_region
          %204 = vsyncadd [#allocation6], 0
          %s206 = sshll.u32 %s4, 4
          %s207 = int_to_ptr.hbm [resolvable:$true] %s206
          %s208 = sshll.u32 [#allocation5], 4
          %s209 = int_to_ptr.vmem [resolvable:$true] %s208
          %211 = dma.hbm_to_vmem [thread:$0]  %s207, 64, %s209, [#allocation6]
        $region28: #{tpu_custom_call.1} parent=11 // pred_fallthru
          _
        // Predicated region
        $region29: #{tpu_custom_call.1} parent=11 // pred_check
          %p212 = pneg %p150
        $region30: #{tpu_custom_call.1} parent=11 // pred_check_branch
          %214 = sbr.rel (%p212) target = $region32
        $region31: #{tpu_custom_call.1} parent=11 // pred_region
          _
        $region32: #{tpu_custom_call.1} parent=11 // pred_fallthru
          _
      $region12: #{tpu_custom_call.1} parent=5 // pred_fallthru
        _
      %p215 = scmp.lt.s32.totalorder %s19, 2
      // Predicated region
      $region33: #{tpu_custom_call.1} parent=5 // pred_check
        %p216 = pneg %p215
      $region34: #{tpu_custom_call.1} parent=5 // pred_check_branch
        %218 = sbr.rel (%p216) target = $region36
      $region35: #{tpu_custom_call.1} parent=5 // pred_region
        // Predicated region
        $region37: #{tpu_custom_call.1} parent=35 // pred_check
          %p219 = pneg %p39
        $region38: #{tpu_custom_call.1} parent=35 // pred_check_branch
          %221 = sbr.rel (%p219) target = $region40
        $region39: #{tpu_custom_call.1} parent=35 // pred_region
          %s222 = sand.u32 %s29, 1
          %s223 = scalar_lea.sflag [#allocation3], %s222
          %s224 = sand.u32 %s29, 1
          %s225 = smul.addr %s224, 8
          %s226 = scalar_lea.vmem [#allocation2], %s225
          %228 = vsyncadd %s223, 0
          %s229 = smul.addr %s19, 2
          %s230 = smul.addr %s229, 4
          %s231 = scalar_lea.hbm %s0, %s230
          %s233 = sshll.u32 %s231, 4
          %s234 = int_to_ptr.hbm [resolvable:$true] %s233
          %s235 = sshll.u32 %s226, 4
          %s236 = int_to_ptr.vmem [resolvable:$true] %s235
          %238 = dma.hbm_to_vmem [thread:$0]  %s234, 128, %s236, %s223
        $region40: #{tpu_custom_call.1} parent=35 // pred_fallthru
          _
      $region36: #{tpu_custom_call.1} parent=5 // pred_fallthru
        _
      %p239 = scmp.le.s32.totalorder 1, %s19
      %p240 = scmp.lt.s32.totalorder %s19, 3
      %p241 = pnand %p239, %p240
      %p242 = pneg %p241
      // Predicated region
      $region41: #{tpu_custom_call.1} parent=5 // pred_check
        _
      $region42: #{tpu_custom_call.1} parent=5 // pred_check_branch
        %244 = sbr.rel (%p241) target = $region44
      $region43: #{tpu_custom_call.1} parent=5 // pred_region
        %s245 = ssub.s32 %s19, 1
        %s246 = sand.u32 %s32, 1
        %s247 = scalar_lea.sflag [#allocation3], %s246
        %s248 = sand.u32 %s32, 1
        %s249 = smul.addr %s248, 8
        %s250 = scalar_lea.vmem [#allocation2], %s249
        // Predicated region
        $region45: #{tpu_custom_call.1} parent=43 // pred_check
          %p251 = pneg %p45
        $region46: #{tpu_custom_call.1} parent=43 // pred_check_branch
          %253 = sbr.rel (%p251) target = $region48
        $region47: #{tpu_custom_call.1} parent=43 // pred_region
          %255 = dma.done %s247, 128
        $region48: #{tpu_custom_call.1} parent=43 // pred_fallthru
          _
        // Predicated region
        $region49: #{tpu_custom_call.1} parent=43 // pred_check
          %p256 = pneg %p129
        $region50: #{tpu_custom_call.1} parent=43 // pred_check_branch
          %258 = sbr.rel (%p256) target = $region52
        $region51: #{tpu_custom_call.1} parent=43 // pred_region
          %260 = dma.done [#allocation6], 64
        $region52: #{tpu_custom_call.1} parent=43 // pred_fallthru
          _
        %s261 = sand.u32 %s32, 1
        %s262 = scalar_lea.sflag [#allocation3], %s261
        %s263 = sand.u32 %s32, 1
        %s264 = smul.addr %s263, 8
        %s265 = scalar_lea.vmem [#allocation2], %s264
        %p266 = pneg %p45
        %p267 = pneg %p42
        %p268 = pneg %p66
        %p269 = pneg %p63
        %p270 = pneg %p87
        %p271 = pneg %p84
        %p272 = pneg %p108
        %p273 = pneg %p105
        %p274 = pneg %p129
        %p275 = pneg %p126
        %p276 = pneg %p150
        %p277 = pneg %p147
        %p278 = pneg %p176
        %p279 = pneg %p173
        %s280 = sand.u32 %s163, 1
        %s281 = scalar_lea.sflag [#allocation4], %s280
        %s282 = sand.u32 %s163, 1
        %s283 = smul.addr %s282, 8
        %s284 = scalar_lea.vmem [#allocation7], %s283
        %v285 = vld [vmem:[%s1] ss:$2 sm:$0x3]
        %vm286 = vcmp.ne.s32.totalorder %v285, 0
        %s287 = scalar_lea.vmem %s1, 1
        %v288 = vld [vmem:[%s287] ss:$2 sm:$0x3]
        %vm289 = vcmp.ne.s32.totalorder %v288, 0
        %v290 = vld [vmem:[%s250] sm:$0xff]
        %292 = vst [vmem:[#allocation1] ss:$2 sm:$0xff] %v290
        %v293 = vld.sshfl [vmem:[#allocation1] sm:$0xff pattern:$0x75316420]
        %294 = vrot.lane.b32.xlu0 %v293, 112
        %v295 = vpop.permute.xlu0 %294
        %297 = vst [vmem:[#allocation1] ss:$2 sm:$0xff] %v290
        %v298 = vld.sshfl [vmem:[#allocation1] sm:$0xff pattern:$0x75316420]
        %v299 = vld.sshfl [vmem:[#allocation1 + $0x8] sm:$0xff pattern:$0x75316420]
        %300 = vrot.lane.b32.xlu0 %v298, 16
        %v301 = vpop.permute.xlu0 %300
        %302 = vrot.lane.b32.xlu0 %v299, 16
        %v303 = vpop.permute.xlu0 %302
        %vm304 = vcmask 130048
        %v305 = vsel %vm304, %v301, %v303
        %v308 = vsel %vm304, %v295, %v301
        %309 = vst [vmem:[#allocation1] ss:$2 sm:$0xff] %v290
        %v310 = vld.sshfl [vmem:[#allocation1] sm:$0xff pattern:$0x75316420]
        %v311 = vld.sshfl [vmem:[#allocation1 + $0x8] sm:$0xff pattern:$0x75316420]
        %312 = vrot.lane.b32.xlu0 %v310, 112
        %v313 = vpop.permute.xlu0 %312
        %314 = vrot.lane.b32.xlu0 %v311, 112
        %v315 = vpop.permute.xlu0 %314
        %vm316 = vcmask 916480
        %v317 = vsel %vm316, %v313, %v315
        %320 = vst [vmem:[#allocation1] ss:$2 sm:$0xff] %v290
        %v321 = vld.sshfl [vmem:[#allocation1 + $0x8] sm:$0xff pattern:$0x75316420]
        %322 = vrot.lane.b32.xlu0 %v321, 16
        %v323 = vpop.permute.xlu0 %322
        %v325 = vsel %vm316, %v315, %v323
        %327 = vrot.lane.b32.xlu0 %v308, 1
        %v328 = vpop.permute.xlu0 %327
        %329 = vrot.lane.b32.xlu0 %v305, 1
        %v330 = vpop.permute.xlu0 %329
        %vm331 = vcmask 7168
        %v332 = vsel %vm331, %v328, %v330
        %v335 = vsel %vm331, %v308, %v328
        %336 = vrot.lane.b32.xlu0 %v308, 127
        %v337 = vpop.permute.xlu0 %336
        %338 = vrot.lane.b32.xlu0 %v305, 127
        %v339 = vpop.permute.xlu0 %338
        %vm340 = vcmask 1039360
        %v341 = vsel %vm340, %v337, %v339
        %v344 = vsel %vm340, %v339, %v305
        %v345 = vsel %vm286, 1, 0
        %v346 = vperm.slane %v345, 0
        %v347 = vperm.slane %v345, 1
        %vm348 = vcmp.eq.s32.totalorder %v346, 1
        %vm349 = vcmp.eq.s32.totalorder %v347, 1
        %v350 = vsel %vm348, %v341, %v335
        %v351 = vsel %vm349, %v344, %v332
        %v352 = vsel %vm289, 1, 0
        %v353 = vperm.slane %v352, 0
        %v354 = vperm.slane %v352, 1
        %vm355 = vcmp.eq.s32.totalorder %v353, 1
        %vm356 = vcmp.eq.s32.totalorder %v354, 1
        %v357 = vsel %vm355, %v335, %v341
        %v358 = vsel %vm356, %v332, %v344
        %359 = vst [vmem:[#allocation1] ss:$2 sm:$0xff] %v290
        %v360 = vld.sshfl [vmem:[#allocation1] sm:$0xff pattern:$0x75316420]
        %v361 = vld.sshfl [vmem:[#allocation1 + $0x8] sm:$0xff pattern:$0x75316420]
        %362 = vrot.lane.b32.xlu0 %v360, 1
        %v363 = vpop.permute.xlu0 %362
        %364 = vrot.lane.b32.xlu0 %v361, 1
        %v365 = vpop.permute.xlu0 %364
        %v366 = vsel %vm331, %v363, %v365
        %v369 = vsel %vm331, %v290, %v363
        %370 = vst [vmem:[#allocation1] ss:$2 sm:$0xff] %v290
        %v371 = vld.sshfl [vmem:[#allocation1] sm:$0xff pattern:$0x75316420]
        %v372 = vld.sshfl [vmem:[#allocation1 + $0x8] sm:$0xff pattern:$0x75316420]
        %373 = vrot.lane.b32.xlu0 %v371, 127
        %v374 = vpop.permute.xlu0 %373
        %375 = vrot.lane.b32.xlu0 %v372, 127
        %v376 = vpop.permute.xlu0 %375
        %v377 = vsel %vm340, %v374, %v376
        %380 = vst [vmem:[#allocation1] ss:$2 sm:$0xff] %v290
        %v381 = vld.sshfl [vmem:[#allocation1 + $0x8] sm:$0xff pattern:$0x75316420]
        %v383 = vsel %vm340, %v376, %v381
        %v384 = vsel %vm348, %v377, %v369
        %v385 = vsel %vm349, %v383, %v366
        %v386 = vsel %vm355, %v369, %v377
        %v387 = vsel %vm356, %v366, %v383
        %389 = vrot.lane.b32.xlu0 %v317, 1
        %v390 = vpop.permute.xlu0 %389
        %391 = vrot.lane.b32.xlu0 %v325, 1
        %v392 = vpop.permute.xlu0 %391
        %v393 = vsel %vm331, %v390, %v392
        %v396 = vsel %vm331, %v317, %v390
        %397 = vrot.lane.b32.xlu0 %v317, 127
        %v398 = vpop.permute.xlu0 %397
        %399 = vrot.lane.b32.xlu0 %v325, 127
        %v400 = vpop.permute.xlu0 %399
        %v401 = vsel %vm340, %v398, %v400
        %v404 = vsel %vm340, %v400, %v325
        %v405 = vsel %vm348, %v401, %v396
        %v406 = vsel %vm349, %v404, %v393
        %v407 = vsel %vm355, %v396, %v401
        %v408 = vsel %vm356, %v393, %v404
        %v409 = vrot.slane %v308, 4
        %v410 = vrot.slane %v305, 4
        %v415 = vrot.slane %v384, 4
        %v416 = vrot.slane %v385, 4
        %419 = vst [vmem:[#allocation1] ss:$2 sm:$0xff] %v290
        %v420 = vld.sshfl [vmem:[#allocation1] sm:$0xff pattern:$0x75316420]
        %v421 = vld.sshfl [vmem:[#allocation1 + $0x8] sm:$0xff pattern:$0x75316420]
        %v426 = vrot.slane %v386, 4
        %v427 = vrot.slane %v387, 4
        %v430 = vrot.slane %v317, 4
        %v431 = vrot.slane %v325, 4
        %vm434 = vcmask 1043456
        %v435 = vsel %vm434, %v350, %v409
        %v436 = vsel %vm434, %v351, %v410
        %v437 = vsel %vm434, %v357, %v415
        %v438 = vsel %vm434, %v358, %v416
        %v439 = vsel %vm434, %v420, %v426
        %v440 = vsel %vm434, %v421, %v427
        %v441 = vsel %vm434, %v405, %v430
        %v442 = vsel %vm434, %v406, %v431
        %v443 = vld [vmem:[%s2] sm:$0xf]
        %v444 = vld [vmem:[%s3] sm:$0xf]
        %446 = vset.pattern.permute.xlu0 0
        %447 = vperm.xlu0 %446, %v444
        %v448 = vpop.permute.xlu0 %447
        %vm450 = vcmask 293888
        %v452 = vsel %vm450, %v443, 0
        %v455 = vsel %vm434, %v407, 0
        %v458 = vsel %vm434, %v408, 0
        %460 = vmatpush.msra.mxu0 0.0
        %461 = vmatpush.msra.mxu0 0.0
        %462 = vmatpush.msra.mxu0 0.0
        %463 = vmatpush.msra.mxu0 0.0
        %464 = vmatpush.msra.mxu0 0.0
        %465 = vmatpush.msra.mxu0 0.0
        %466 = vmatpush.msra.mxu0 0.0
        %467 = vmatpush.msra.mxu0 0.0
        %468 = vmatpush.msra.mxu0 0.0
        %469 = vmatpush.msra.mxu0 0.0
        %470 = vmatpush.msra.mxu0 0.0
        %471 = vmatpush.msra.mxu0 %v455
        %472 = vmatpush.msra.mxu0 %v441
        %473 = vmatpush.msra.mxu0 %v439
        %474 = vmatpush.msra.mxu0 %v437
        %475 = vmatpush.msra.mxu0 %v435
        %476 = vmatmul.f32.gmra.mxu0 %v452
        %v477 = vpop.f32.mrf.mxu0
        %v478 = vadd.f32 %v448, %v477
        %479 = vdwg.mxu0
        %480 = vmatpush.msra.mxu0 0.0
        %481 = vmatpush.msra.mxu0 0.0
        %482 = vmatpush.msra.mxu0 0.0
        %483 = vmatpush.msra.mxu0 0.0
        %484 = vmatpush.msra.mxu0 0.0
        %485 = vmatpush.msra.mxu0 0.0
        %486 = vmatpush.msra.mxu0 0.0
        %487 = vmatpush.msra.mxu0 0.0
        %488 = vmatpush.msra.mxu0 0.0
        %489 = vmatpush.msra.mxu0 0.0
        %490 = vmatpush.msra.mxu0 0.0
        %491 = vmatpush.msra.mxu0 %v458
        %492 = vmatpush.msra.mxu0 %v442
        %493 = vmatpush.msra.mxu0 %v440
        %494 = vmatpush.msra.mxu0 %v438
        %495 = vmatpush.msra.mxu0 %v436
        %496 = vmatmul.f32.gmra.mxu0 %v452
        %v497 = vpop.f32.mrf.mxu0
        %v498 = vadd.f32 %v448, %v497
        %499 = vdwg.mxu0
        %v500 = vsel %vm434, %v478, 0.0
        %v501 = vsel %vm434, %v498, 0.0
        %v502 = vadd.f32 %v500, %v501
        %503 = vadd.xlane.f32.xlu0 %v502
        %v504 = vpop.xlane.xlu0 %503
        %v505 = vrcp.pop 256.0
        %v506 = vmul.f32 256.0, %v505
        %v507 = vsub.f32 1.0, %v506
        %v508 = vmul.f32 %v505, %v507
        %v509 = vadd.f32 %v505, %v508
        %vm510 = vweird.f32 %v505
        %v511 = vsel %vm510, %v505, %v509
        %v512 = vmul.f32 %v504, %v511
        %v513 = vsub.f32 %v478, %v512
        %v514 = vsub.f32 %v498, %v512
        %v515 = vmul.f32 %v513, %v513
        %v516 = vmul.f32 %v514, %v514
        %v517 = vsel %vm434, %v515, 0.0
        %v518 = vsel %vm434, %v516, 0.0
        %v519 = vadd.f32 %v517, %v518
        %520 = vadd.xlane.f32.xlu0 %v519
        %v521 = vpop.xlane.xlu0 %520
        %v522 = vmul.f32 %v521, %v511
        %v523 = vadd.f32 %v522, 1e-05
        %v524 = vrsqrt.pop %v523
        %v525 = vmul.f32 %v524, %v523
        %v526 = vmul.f32 %v525, %v524
        %v527 = vmul.f32 0.5, %v526
        %v528 = vsub.f32 1.5, %v527
        %v529 = vmul.f32 %v524, %v528
        %vm530 = vweird.f32 %v523
        %vm531 = vweird.f32 %v524
        %vm532 = vmor %vm530, %vm531
        %v533 = vsel %vm532, %v524, %v529
        %v534 = vmul.f32 %v513, %v533
        %v535 = vmul.f32 %v514, %v533
        %v536 = vmax.f32 %v534, 0.0
        %v537 = vmax.f32 %v535, 0.0
        %539 = vrot.lane.b32.xlu0 %v536, 112
        %v540 = vpop.permute.xlu0 %539
        %543 = vrot.lane.b32.xlu0 %v536, 16
        %v544 = vpop.permute.xlu0 %543
        %545 = vrot.lane.b32.xlu0 %v537, 16
        %v546 = vpop.permute.xlu0 %545
        %v547 = vsel %vm304, %v544, %v546
        %v550 = vsel %vm304, %v540, %v544
        %551 = vrot.lane.b32.xlu0 %v537, 112
        %v552 = vpop.permute.xlu0 %551
        %v553 = vsel %vm316, %v540, %v552
        %v557 = vsel %vm316, %v552, %v546
        %559 = vrot.lane.b32.xlu0 %v550, 1
        %v560 = vpop.permute.xlu0 %559
        %561 = vrot.lane.b32.xlu0 %v547, 1
        %v562 = vpop.permute.xlu0 %561
        %v563 = vsel %vm331, %v560, %v562
        %v566 = vsel %vm331, %v550, %v560
        %567 = vrot.lane.b32.xlu0 %v550, 127
        %v568 = vpop.permute.xlu0 %567
        %569 = vrot.lane.b32.xlu0 %v547, 127
        %v570 = vpop.permute.xlu0 %569
        %v571 = vsel %vm340, %v568, %v570
        %v574 = vsel %vm340, %v570, %v547
        %v575 = vsel %vm348, %v571, %v566
        %v576 = vsel %vm349, %v574, %v563
        %v577 = vsel %vm355, %v566, %v571
        %v578 = vsel %vm356, %v563, %v574
        %579 = vrot.lane.b32.xlu0 %v536, 1
        %v580 = vpop.permute.xlu0 %579
        %581 = vrot.lane.b32.xlu0 %v537, 1
        %v582 = vpop.permute.xlu0 %581
        %v583 = vsel %vm331, %v580, %v582
        %v586 = vsel %vm331, %v536, %v580
        %587 = vrot.lane.b32.xlu0 %v536, 127
        %v588 = vpop.permute.xlu0 %587
        %589 = vrot.lane.b32.xlu0 %v537, 127
        %v590 = vpop.permute.xlu0 %589
        %v591 = vsel %vm340, %v588, %v590
        %v594 = vsel %vm340, %v590, %v537
        %v595 = vsel %vm348, %v591, %v586
        %v596 = vsel %vm349, %v594, %v583
        %v597 = vsel %vm355, %v586, %v591
        %v598 = vsel %vm356, %v583, %v594
        %600 = vrot.lane.b32.xlu0 %v553, 1
        %v601 = vpop.permute.xlu0 %600
        %602 = vrot.lane.b32.xlu0 %v557, 1
        %v603 = vpop.permute.xlu0 %602
        %v604 = vsel %vm331, %v601, %v603
        %v607 = vsel %vm331, %v553, %v601
        %608 = vrot.lane.b32.xlu0 %v553, 127
        %v609 = vpop.permute.xlu0 %608
        %610 = vrot.lane.b32.xlu0 %v557, 127
        %v611 = vpop.permute.xlu0 %610
        %v612 = vsel %vm340, %v609, %v611
        %v615 = vsel %vm340, %v611, %v557
        %v616 = vsel %vm348, %v612, %v607
        %v617 = vsel %vm349, %v615, %v604
        %v618 = vsel %vm355, %v607, %v612
        %v619 = vsel %vm356, %v604, %v615
        %v620 = vrot.slane %v550, 4
        %v621 = vrot.slane %v547, 4
        %v626 = vrot.slane %v595, 4
        %v627 = vrot.slane %v596, 4
        %v632 = vrot.slane %v597, 4
        %v633 = vrot.slane %v598, 4
        %v636 = vrot.slane %v553, 4
        %v637 = vrot.slane %v557, 4
        %v640 = vsel %vm434, %v575, %v620
        %v641 = vsel %vm434, %v576, %v621
        %v642 = vsel %vm434, %v577, %v626
        %v643 = vsel %vm434, %v578, %v627
        %v644 = vsel %vm434, %v536, %v632
        %v645 = vsel %vm434, %v537, %v633
        %v646 = vsel %vm434, %v616, %v636
        %v647 = vsel %vm434, %v617, %v637
        %v648 = vld [vmem:[#allocation5] sm:$0xf]
        %v649 = vld [vmem:[%s5] sm:$0xf]
        %651 = vset.pattern.permute.xlu0 0
        %652 = vperm.xlu0 %651, %v649
        %v653 = vpop.permute.xlu0 %652
        %v656 = vsel %vm450, %v648, 0
        %v659 = vsel %vm434, %v618, 0
        %v662 = vsel %vm434, %v619, 0
        %664 = vmatpush.msra.mxu0 0.0
        %665 = vmatpush.msra.mxu0 0.0
        %666 = vmatpush.msra.mxu0 0.0
        %667 = vmatpush.msra.mxu0 0.0
        %668 = vmatpush.msra.mxu0 0.0
        %669 = vmatpush.msra.mxu0 0.0
        %670 = vmatpush.msra.mxu0 0.0
        %671 = vmatpush.msra.mxu0 0.0
        %672 = vmatpush.msra.mxu0 0.0
        %673 = vmatpush.msra.mxu0 0.0
        %674 = vmatpush.msra.mxu0 0.0
        %675 = vmatpush.msra.mxu0 %v659
        %676 = vmatpush.msra.mxu0 %v646
        %677 = vmatpush.msra.mxu0 %v644
        %678 = vmatpush.msra.mxu0 %v642
        %679 = vmatpush.msra.mxu0 %v640
        %680 = vmatmul.f32.gmra.mxu0 %v656
        %v681 = vpop.f32.mrf.mxu0
        %v682 = vadd.f32 %v653, %v681
        %683 = vdwg.mxu0
        %684 = vmatpush.msra.mxu0 0.0
        %685 = vmatpush.msra.mxu0 0.0
        %686 = vmatpush.msra.mxu0 0.0
        %687 = vmatpush.msra.mxu0 0.0
        %688 = vmatpush.msra.mxu0 0.0
        %689 = vmatpush.msra.mxu0 0.0
        %690 = vmatpush.msra.mxu0 0.0
        %691 = vmatpush.msra.mxu0 0.0
        %692 = vmatpush.msra.mxu0 0.0
        %693 = vmatpush.msra.mxu0 0.0
        %694 = vmatpush.msra.mxu0 0.0
        %695 = vmatpush.msra.mxu0 %v662
        %696 = vmatpush.msra.mxu0 %v647
        %697 = vmatpush.msra.mxu0 %v645
        %698 = vmatpush.msra.mxu0 %v643
        %699 = vmatpush.msra.mxu0 %v641
        %700 = vmatmul.f32.gmra.mxu0 %v656
        %v701 = vpop.f32.mrf.mxu0
        %v702 = vadd.f32 %v653, %v701
        %703 = vdwg.mxu0
        %v704 = vsel %vm434, %v682, 0.0
        %v705 = vsel %vm434, %v702, 0.0
        %v706 = vadd.f32 %v704, %v705
        %707 = vadd.xlane.f32.xlu0 %v706
        %v708 = vpop.xlane.xlu0 %707
        %v709 = vmul.f32 %v708, %v511
        %v710 = vsub.f32 %v682, %v709
        %v711 = vsub.f32 %v702, %v709
        %v712 = vmul.f32 %v710, %v710
        %v713 = vmul.f32 %v711, %v711
        %v714 = vsel %vm434, %v712, 0.0
        %v715 = vsel %vm434, %v713, 0.0
        %v716 = vadd.f32 %v714, %v715
        %717 = vadd.xlane.f32.xlu0 %v716
        %v718 = vpop.xlane.xlu0 %717
        %v719 = vmul.f32 %v718, %v511
        %v720 = vadd.f32 %v719, 1e-05
        %v721 = vrsqrt.pop %v720
        %v722 = vmul.f32 %v721, %v720
        %v723 = vmul.f32 %v722, %v721
        %v724 = vmul.f32 0.5, %v723
        %v725 = vsub.f32 1.5, %v724
        %v726 = vmul.f32 %v721, %v725
        %vm727 = vweird.f32 %v720
        %vm728 = vweird.f32 %v721
        %vm729 = vmor %vm727, %vm728
        %v730 = vsel %vm729, %v721, %v726
        %v731 = vmul.f32 %v710, %v730
        %v732 = vmul.f32 %v711, %v730
        %v735 = vrot.slane %v732, 4
        %v736 = vsel %vm434, %v731, %v735
        %v738 = vadd.f32 %v290, %v736
        %739 = vst [vmem:[%s284] sm:$0xff] %v738
        %s740 = sand.u32 %s163, 1
        %s741 = scalar_lea.sflag [#allocation4], %s740
        %s742 = sand.u32 %s163, 1
        %s743 = smul.addr %s742, 8
        %s744 = scalar_lea.vmem [#allocation7], %s743
        // Predicated region
        $region53: #{tpu_custom_call.1} parent=43 // pred_check
          %p745 = pneg %p173
        $region54: #{tpu_custom_call.1} parent=43 // pred_check_branch
          %747 = sbr.rel (%p745) target = $region56
        $region55: #{tpu_custom_call.1} parent=43 // pred_region
          %749 = vsyncadd %s741, 0
          %s750 = smul.addr %s24, 2
          %s751 = smul.addr %s750, 4
          %s752 = scalar_lea.hbm %s6, %s751
          %s754 = sshll.u32 %s744, 4
          %s755 = int_to_ptr.vmem [resolvable:$true] %s754
          %s756 = sshll.u32 %s752, 4
          %s757 = int_to_ptr.hbm [resolvable:$true] %s756
          %759 = dma.vmem_to_hbm [thread:$0]  %s755, 128, %s757, %s741
        $region56: #{tpu_custom_call.1} parent=43 // pred_fallthru
          _
      $region44: #{tpu_custom_call.1} parent=5 // pred_fallthru
        _
      %p760 = scmp.le.s32.totalorder 2, %s19
      // Predicated region
      $region57: #{tpu_custom_call.1} parent=5 // pred_check
        %p761 = pneg %p760
      $region58: #{tpu_custom_call.1} parent=5 // pred_check_branch
        %763 = sbr.rel (%p761) target = $region60
      $region59: #{tpu_custom_call.1} parent=5 // pred_region
        %s764 = ssub.s32 %s19, 2
        // Predicated region
        $region61: #{tpu_custom_call.1} parent=59 // pred_check
          %p765 = pneg %p179
        $region62: #{tpu_custom_call.1} parent=59 // pred_check_branch
          %767 = sbr.rel (%p765) target = $region64
        $region63: #{tpu_custom_call.1} parent=59 // pred_region
          %s768 = sand.u32 %s164, 1
          %s769 = scalar_lea.sflag [#allocation4], %s768
          %s770 = sand.u32 %s164, 1
          %s771 = smul.addr %s770, 8
          %s772 = scalar_lea.vmem [#allocation7], %s771
          %774 = dma.done %s769, 128
        $region64: #{tpu_custom_call.1} parent=59 // pred_fallthru
          _
      $region60: #{tpu_custom_call.1} parent=5 // pred_fallthru
        _
    $region6: #{tpu_custom_call.1} parent=1 // loop_footer
      %s23 = sadd.s32 1, %s19
    $region7: #{tpu_custom_call.1} parent=1 // loop_footer_branch
      %18 = sbr.rel target = $region3
    $region8: #{tpu_custom_call.1} parent=1 // loop_exit
      _
    %775 = vsyncpa [#allocation3], 1
    %s776 = scalar_lea.sflag [#allocation3], 1
    %777 = vsyncpa %s776, 1
    %778 = vsyncpa [#allocation6], 1
    %779 = vsyncpa [#allocation4], 1
    %s780 = scalar_lea.sflag [#allocation4], 1
    %781 = vsyncpa %s780, 1

</llo_original>
